<compile_context>
chip_gen: v6e
topology: v6e:2x2x1
jax: 0.10.0
libtpu: 0.0.40
codegen_flags: <defaults>
</compile_context>

<pallas_src>
import functools

import jax
import jax.numpy as jnp
from jax.experimental import pallas as pl
from jax.experimental.pallas import tpu as pltpu


# ----------------------------- Pallas kernel ------------------------------ #
def _se_kernel(x_ref, w1t_ref, b1_ref, w2_ref, b2_ref, o_ref, *, inv_hw, nb):
    """Processes `nb` batch elements per grid step.

    x_ref  : (nb, C, HWp)  feature map, lane-dense (zero-padded) last dim
    w1t_ref: (C, Csq)      fc1 weight, pre-transposed (torch layout is (Csq, C))
    b1_ref : (1, Csq)      fc1 bias
    w2_ref : (C, Csq)      fc2 weight (torch layout (C, Csq) already matches)
    b2_ref : (C, 1)        fc2 bias
    o_ref  : (nb, C, HWp)
    """
    inv_hw = jnp.float32(inv_hw)
    for n in range(nb):  # static unroll; rows are independent, stores end each iter
        # ---- squeeze: global average pool (pad lanes are zeros; inv_hw = 1/true_HW) ----
        y = jnp.sum(x_ref[n].astype(jnp.float32), axis=1, keepdims=True) * inv_hw  # (C, 1)

        # ---- fc1 + SiLU: lane-broadcast multiply + sublane reduce (no MXU) ----
        z = jnp.sum(w1t_ref[...] * y, axis=0, keepdims=True) + b1_ref[...]         # (1, Csq)
        z = z * jax.nn.sigmoid(z)

        # ---- fc2 + sigmoid: sublane-broadcast multiply + lane reduce ----
        g = jnp.sum(w2_ref[...] * z, axis=1, keepdims=True) + b2_ref[...]          # (C, 1)
        g = jax.nn.sigmoid(g)

        # ---- excite: fresh VMEM re-load keeps vreg pressure flat; full-lane stores ----
        o_ref[n] = (x_ref[n].astype(jnp.float32) * g).astype(o_ref.dtype)


# ------------------------------- wrapper ---------------------------------- #
def squeeze_excitation(x_nchw, params, *, target_step_bytes=2 << 20):
    """x_nchw: (N, C, H, W) float32 or bfloat16.  params in PyTorch nn.Linear layout:
       w1 (Csq, C), b1 (Csq,), w2 (C_out, Csq), b2 (C_out,).
       Returns (N, C, H, W) in x's dtype.
    """
    N, C, H, W = x_nchw.shape
    HW = H * W
    Csq = params["w1"].shape[0]
    # TODO(synk): the torch forward's `.view(b, c, 1, 1)` requires output_c == input_c
    # (the original model.py even calls SqueezeExcitation with output_c missing);
    # implemented with output_c == C.
    assert params["w2"].shape[0] == C

    dtype = x_nchw.dtype
    itemsize = jnp.dtype(dtype).itemsize

    # Lane-dense layout: flatten HW and zero-pad to a multiple of 128 so every
    # output store is an unmasked full-lane vst.  Mean stays exact via inv_hw.
    HWp = ((HW + 127) // 128) * 128
    x = x_nchw.reshape(N, C, HW)
    if HWp != HW:
        x = jnp.pad(x, ((0, 0), (0, 0), (0, HWp - HW)))

    # Batch elements per grid step: ~target_step_bytes of in+out HBM traffic per
    # step; keep >= 2 grid steps whenever N >= 2 (v7x megacore load-balancing).
    per_elem_bytes = 2 * C * HWp * itemsize
    nb = int(max(1, min(N, target_step_bytes // per_elem_bytes)))
    if N >= 2:
        nb = min(nb, (N + 1) // 2)
    Np = ((N + nb - 1) // nb) * nb
    if Np != N:  # cheap zero-pad so every block is full (only when N % nb != 0)
        x = jnp.pad(x, ((0, Np - N), (0, 0), (0, 0)))
    grid = (Np // nb,)

    w1t = params["w1"].astype(jnp.float32).T           # (C, Csq)
    b1 = params["b1"].astype(jnp.float32).reshape(1, Csq)
    w2 = params["w2"].astype(jnp.float32)               # (C, Csq)
    b2 = params["b2"].astype(jnp.float32).reshape(C, 1)

    # Explicit VMEM budget: double-buffered in + out slabs + weights + headroom.
    slab_bytes = nb * C * HWp * itemsize
    vmem_limit = int(min(max(4 * slab_bytes + (2 << 20), 16 << 20), 56 << 20))

    kernel = functools.partial(_se_kernel, inv_hw=1.0 / HW, nb=nb)

    out = pl.pallas_call(
        kernel,
        out_shape=jax.ShapeDtypeStruct((Np, C, HWp), dtype),
        grid_spec=pltpu.PrefetchScalarGridSpec(
            num_scalar_prefetch=0,
            grid=grid,
            in_specs=[
                pl.BlockSpec((nb, C, HWp), lambda n: (n, 0, 0)),
                pl.BlockSpec((C, Csq), lambda n: (0, 0)),
                pl.BlockSpec((1, Csq), lambda n: (0, 0)),
                pl.BlockSpec((C, Csq), lambda n: (0, 0)),
                pl.BlockSpec((C, 1), lambda n: (0, 0)),
            ],
            out_specs=pl.BlockSpec((nb, C, HWp), lambda n: (n, 0, 0)),
        ),
        compiler_params=pltpu.CompilerParams(
            dimension_semantics=("parallel",),
            vmem_limit_bytes=vmem_limit,
        ),
    )(x, w1t, b1, w2, b2)

    return out[:N, :, :HW].reshape(N, C, H, W)


# ----------------------------- JAX reference ------------------------------ #
def reference(x, p):
    y = jnp.mean(x, axis=(2, 3))                           # avg_pool + flatten -> (N, C)
    z = y @ p["w1"].T + p["b1"]                            # fc1
    z = z * jax.nn.sigmoid(z)                              # SiLU
    g = jax.nn.sigmoid(z @ p["w2"].T + p["b2"])            # fc2 + Sigmoid -> (N, C)
    return x * g[:, :, None, None]                         # expand_as + multiply


# --------------------------------- main ------------------------------------ #
if __name__ == "__main__":
    # SqueezeExcitation(input_c=64, output_c=64, squeeze_factor=4)
    N, C, H, W = 2, 64, 16, 16
    Csq = C // 4

    key = jax.random.PRNGKey(0)
    kx, k1, k2, k3, k4 = jax.random.split(key, 5)
    x = jax.random.normal(kx, (N, C, H, W), jnp.float32)
    params = {
        "w1": 0.1 * jax.random.normal(k1, (Csq, C), jnp.float32),   # fc1.weight
        "b1": 0.1 * jax.random.normal(k2, (Csq,), jnp.float32),     # fc1.bias
        "w2": 0.1 * jax.random.normal(k3, (C, Csq), jnp.float32),   # fc2.weight
        "b2": 0.1 * jax.random.normal(k4, (C,), jnp.float32),       # fc2.bias
    }

    # f32 I/O
    out = jax.block_until_ready(squeeze_excitation(x, params))
    ref = jax.block_until_ready(reference(x, params))
    assert out.shape == (N, C, H, W)
    assert jnp.allclose(out, ref, atol=1e-4, rtol=1e-4), float(jnp.max(jnp.abs(out - ref)))

    # bf16 I/O (x/out in bf16, in-kernel math stays f32)
    x_bf = x.astype(jnp.bfloat16)
    out_bf = jax.block_until_ready(squeeze_excitation(x_bf, params))
    ref_bf = reference(x_bf.astype(jnp.float32), params)
    assert out_bf.dtype == jnp.bfloat16
    assert jnp.allclose(out_bf.astype(jnp.float32), ref_bf, atol=3e-2, rtol=3e-2)

    print("KERNEL_OK")
</pallas_src>

<mosaic_0001>
module attributes {stable_mosaic.version = 11 : i64} {
  func.func @_se_kernel(%arg0: i32, %arg1: memref<1x64x256xf32, #tpu.memory_space<vmem>>, %arg2: memref<64x16xf32, #tpu.memory_space<vmem>>, %arg3: memref<1x16xf32, #tpu.memory_space<vmem>>, %arg4: memref<64x16xf32, #tpu.memory_space<vmem>>, %arg5: memref<64x1xf32, #tpu.memory_space<vmem>>, %arg6: memref<1x64x256xf32, #tpu.memory_space<vmem>>) attributes {dimension_semantics = [#tpu.dimension_semantics<parallel>], iteration_bounds = array<i64: 2>, scalar_prefetch = 0 : i64, scratch_operands = 0 : i64, tpu.core_type = #tpu.core_type<tc>, window_params = [{transform_indices = @transform_0, window_bounds = array<i64: 1, 64, 256>}, {pipeline_mode = #tpu.pipeline_mode<synchronous>, transform_indices = @transform_1, window_bounds = array<i64: 64, 16>}, {pipeline_mode = #tpu.pipeline_mode<synchronous>, transform_indices = @transform_2, window_bounds = array<i64: 1, 16>}, {pipeline_mode = #tpu.pipeline_mode<synchronous>, transform_indices = @transform_3, window_bounds = array<i64: 64, 16>}, {pipeline_mode = #tpu.pipeline_mode<synchronous>, transform_indices = @transform_4, window_bounds = array<i64: 64, 1>}, {transform_indices = @transform_5, window_bounds = array<i64: 1, 64, 256>}]} {
    %c0 = arith.constant 0 : index
    %c0_0 = arith.constant 0 : index
    %c0_1 = arith.constant 0 : index
    %0 = vector.load %arg1[%c0, %c0_0, %c0_1] : memref<1x64x256xf32, #tpu.memory_space<vmem>>, vector<1x64x256xf32>
    %1 = vector.shape_cast %0 : vector<1x64x256xf32> to vector<64x256xf32>
    %cst = arith.constant dense<0.000000e+00> : vector<64xf32>
    %2 = vector.multi_reduction <add>, %1, %cst [1] : vector<64x256xf32> to vector<64xf32>
    %3 = vector.shape_cast %2 : vector<64xf32> to vector<64x1xf32>
    %cst_2 = arith.constant 3.906250e-03 : f32
    %4 = vector.broadcast %cst_2 : f32 to vector<64x1xf32>
    %5 = arith.mulf %3, %4 : vector<64x1xf32>
    %c0_3 = arith.constant 0 : index
    %c0_4 = arith.constant 0 : index
    %6 = vector.load %arg2[%c0_3, %c0_4] : memref<64x16xf32, #tpu.memory_space<vmem>>, vector<64x16xf32>
    %7 = vector.broadcast %5 : vector<64x1xf32> to vector<64x16xf32>
    %8 = arith.mulf %6, %7 : vector<64x16xf32>
    %cst_5 = arith.constant dense<0.000000e+00> : vector<16xf32>
    %9 = vector.multi_reduction <add>, %8, %cst_5 [0] : vector<64x16xf32> to vector<16xf32>
    %10 = vector.shape_cast %9 : vector<16xf32> to vector<1x16xf32>
    %c0_6 = arith.constant 0 : index
    %c0_7 = arith.constant 0 : index
    %11 = vector.load %arg3[%c0_6, %c0_7] : memref<1x16xf32, #tpu.memory_space<vmem>>, vector<1x16xf32>
    %12 = arith.addf %10, %11 : vector<1x16xf32>
    %13 = arith.negf %12 : vector<1x16xf32>
    %14 = math.exp %13 : vector<1x16xf32>
    %cst_8 = arith.constant 1.000000e+00 : f32
    %15 = vector.broadcast %cst_8 : f32 to vector<1x16xf32>
    %16 = arith.addf %15, %14 : vector<1x16xf32>
    %17 = arith.divf %15, %16 : vector<1x16xf32>
    %18 = arith.mulf %12, %17 : vector<1x16xf32>
    %c0_9 = arith.constant 0 : index
    %c0_10 = arith.constant 0 : index
    %19 = vector.load %arg4[%c0_9, %c0_10] : memref<64x16xf32, #tpu.memory_space<vmem>>, vector<64x16xf32>
    %20 = vector.broadcast %18 : vector<1x16xf32> to vector<64x16xf32>
    %21 = arith.mulf %19, %20 : vector<64x16xf32>
    %cst_11 = arith.constant dense<0.000000e+00> : vector<64xf32>
    %22 = vector.multi_reduction <add>, %21, %cst_11 [1] : vector<64x16xf32> to vector<64xf32>
    %23 = vector.shape_cast %22 : vector<64xf32> to vector<64x1xf32>
    %c0_12 = arith.constant 0 : index
    %c0_13 = arith.constant 0 : index
    %24 = vector.load %arg5[%c0_12, %c0_13] : memref<64x1xf32, #tpu.memory_space<vmem>>, vector<64x1xf32>
    %25 = arith.addf %23, %24 : vector<64x1xf32>
    %26 = arith.negf %25 : vector<64x1xf32>
    %27 = math.exp %26 : vector<64x1xf32>
    %cst_14 = arith.constant 1.000000e+00 : f32
    %28 = vector.broadcast %cst_14 : f32 to vector<64x1xf32>
    %29 = arith.addf %28, %27 : vector<64x1xf32>
    %30 = arith.divf %28, %29 : vector<64x1xf32>
    %c0_15 = arith.constant 0 : index
    %c0_16 = arith.constant 0 : index
    %c0_17 = arith.constant 0 : index
    %31 = vector.load %arg1[%c0_15, %c0_16, %c0_17] : memref<1x64x256xf32, #tpu.memory_space<vmem>>, vector<1x64x256xf32>
    %32 = vector.shape_cast %31 : vector<1x64x256xf32> to vector<64x256xf32>
    %33 = vector.broadcast %30 : vector<64x1xf32> to vector<64x256xf32>
    %34 = arith.mulf %32, %33 : vector<64x256xf32>
    %c0_18 = arith.constant 0 : index
    %c0_19 = arith.constant 0 : index
    %c0_20 = arith.constant 0 : index
    %35 = vector.load %arg6[%c0_18, %c0_19, %c0_20] : memref<1x64x256xf32, #tpu.memory_space<vmem>>, vector<1x64x256xf32>
    %36 = vector.shape_cast %35 : vector<1x64x256xf32> to vector<64x256xf32>
    %37 = vector.shape_cast %34 : vector<64x256xf32> to vector<1x64x256xf32>
    tpu.vector_store %arg6[%c0_18, %c0_19, %c0_20], %37 {strides = array<i32>} : memref<1x64x256xf32, #tpu.memory_space<vmem>>, vector<1x64x256xf32>,
    return
  }
  func.func @transform_0(%arg0: i32) -> (i32, i32, i32) {
    %c0_i32 = arith.constant 0 : i32
    %c0_i32_0 = arith.constant 0 : i32
    %c0_i32_1 = arith.constant 0 : i32
    return %arg0, %c0_i32, %c0_i32_0 : i32, i32, i32
  }
  func.func @transform_1(%arg0: i32) -> (i32, i32) {
    %c0_i32 = arith.constant 0 : i32
    %c0_i32_0 = arith.constant 0 : i32
    %c0_i32_1 = arith.constant 0 : i32
    return %c0_i32, %c0_i32_0 : i32, i32
  }
  func.func @transform_2(%arg0: i32) -> (i32, i32) {
    %c0_i32 = arith.constant 0 : i32
    %c0_i32_0 = arith.constant 0 : i32
    %c0_i32_1 = arith.constant 0 : i32
    return %c0_i32, %c0_i32_0 : i32, i32
  }
  func.func @transform_3(%arg0: i32) -> (i32, i32) {
    %c0_i32 = arith.constant 0 : i32
    %c0_i32_0 = arith.constant 0 : i32
    %c0_i32_1 = arith.constant 0 : i32
    return %c0_i32, %c0_i32_0 : i32, i32
  }
  func.func @transform_4(%arg0: i32) -> (i32, i32) {
    %c0_i32 = arith.constant 0 : i32
    %c0_i32_0 = arith.constant 0 : i32
    %c0_i32_1 = arith.constant 0 : i32
    return %c0_i32, %c0_i32_0 : i32, i32
  }
  func.func @transform_5(%arg0: i32) -> (i32, i32, i32) {
    %c0_i32 = arith.constant 0 : i32
    %c0_i32_0 = arith.constant 0 : i32
    %c0_i32_1 = arith.constant 0 : i32
    return %arg0, %c0_i32, %c0_i32_0 : i32, i32, i32
  }
}

</mosaic_0001>

<llo_original>
// kernel: tpu_custom_call.1
$region0: #{tpu_custom_call.1}
  #allocation0 [shape = 'u32[]', space=smem, size = 0x4, offset = 0x4, fixed_abs, tag = 'smem constant byte address 0x4 - core index']
  #allocation1 [shape = 'u32[144,128]{1,0:T(1,128)}', space=vmem, size = 0x12000, scoped, tag = 'internal scratch']
  %s0 = inlined_call_operand.hbm [shape: f32[2,64,256], index: 0, kind: input, shape index: {}]
  %s1 = inlined_call_operand.vmem [shape: f32[64,16], index: 1, kind: input, shape index: {}]
  %s2 = inlined_call_operand.vmem [shape: f32[1,16], index: 2, kind: input, shape index: {}]
  %s3 = inlined_call_operand.vmem [shape: f32[64,16], index: 3, kind: input, shape index: {}]
  %s4 = inlined_call_operand.vmem [shape: f32[64,1], index: 4, kind: input, shape index: {}]
  %s5 = inlined_call_operand.hbm [shape: f32[2,64,256], index: 5, kind: output, shape index: {}]
  %s6 = sld [smem:[#allocation0]]
  $region57: #{tpu_custom_call.1} parent=0
    _
  %s8 = ssub.s32 1, %s6
  %s9 = scalar_select 0, %s8, %s6
  $region1: #{tpu_custom_call.1} parent=0
    #allocation2 [shape = 'u8[131072]{0}', space=vmem, size = 0x20000, scoped, tag = 'input window, operand 0']
    #allocation3 [shape = 's32[2]{0}', space=sflag, size = 0x8, scoped, tag = 'scoped memory for tpu_custom_call.1']
    #allocation4 [shape = 's32[2]{0}', space=sflag, size = 0x8, scoped, tag = 'scoped memory for tpu_custom_call.1']
    #allocation5 [shape = 'u8[131072]{0}', space=vmem, size = 0x20000, scoped, tag = 'output window, operand 0']
    %10 = vsyncpa [#allocation3], 0
    %s11 = scalar_lea.sflag [#allocation3], 1
    %12 = vsyncpa %s11, 0
    %13 = vsyncpa [#allocation4], 0
    %s14 = scalar_lea.sflag [#allocation4], 1
    %15 = vsyncpa %s14, 0
    loop: start=0, step=1, limit=4
    $region2: #{tpu_custom_call.1} parent=1 // loop_pre_header
      _
    $region3: #{tpu_custom_call.1} parent=1 // loop_header
      %s17 = sphi 0, %s21
      %p18 = scmp.ge.s32.totalorder %s17, 4
      %s27 = sphi 0, %s29
      %s30 = sphi 0, %s27
      %s31 = sphi 0, %s30
      %s47 = sphi 0, %s31
      %s51 = sphi 0, %s51
      %s53 = sphi 0, %s51
      %s54 = sphi 0, %s53
      %s68 = sphi 0, %s54
      %s72 = sphi 0, %s72
      %s74 = sphi 0, %s72
      %s75 = sphi 0, %s74
      %s89 = sphi 0, %s75
      %s93 = sphi 0, %s93
      %s95 = sphi 0, %s93
      %s96 = sphi 0, %s95
      %s110 = sphi 0, %s96
      %s114 = sphi 0, %s114
      %s116 = sphi 0, %s114
      %s117 = sphi 0, %s116
      %s131 = sphi 0, %s117
      %s137 = sphi 0, %s139
      %s140 = sphi 0, %s137
      %s141 = sphi 0, %s140
      %s157 = sphi 0, %s141
    $region4: #{tpu_custom_call.1} parent=1 // loop_header_branch
      %20 = sbr.rel (%p18) target = $region8
    $region5: #{tpu_custom_call.1} parent=1 // loop_body
      %s22 = ssub.s32 %s17, 1
      %s23 = ssub.s32 %s17, 2
      %s24 = sadd.s32 %s17, 1
      %s25 = ssub.s32 %s17, %s24
      %p26 = scmp.eq.s32.totalorder %s25, 0
      %s28 = sadd.s32 %s27, 1
      %s29 = scalar_select %p26, %s27, %s28
      %p32 = pneg %p26
      %p33 = scmp.eq.s32.totalorder %s17, 1
      %p34 = por %p32, %p33
      %p35 = scmp.ne.s32.totalorder %s27, %s30
      %p36 = scmp.eq.s32.totalorder %s17, 0
      %p37 = por %p35, %p36
      %p38 = scmp.ne.s32.totalorder %s27, %s30
      %p39 = scmp.eq.s32.totalorder %s22, 1
      %p40 = por %p38, %p39
      %p41 = scmp.ne.s32.totalorder %s30, %s31
      %p42 = scmp.eq.s32.totalorder %s22, 0
      %p43 = por %p41, %p42
      %p44 = scmp.ne.s32.totalorder %s30, %s31
      %p45 = scmp.eq.s32.totalorder %s23, 1
      %p46 = por %p44, %p45
      %p48 = scmp.ne.s32.totalorder %s31, %s47
      %p49 = scmp.eq.s32.totalorder %s23, 0
      %p50 = por %p48, %p49
      %s52 = sadd.s32 %s51, 1
      %p55 = scmp.eq.s32.totalorder %s17, 1
      %p56 = scmp.ne.s32.totalorder %s51, %s53
      %p57 = scmp.eq.s32.totalorder %s17, 0
      %p58 = por %p56, %p57
      %p59 = scmp.ne.s32.totalorder %s51, %s53
      %p60 = scmp.eq.s32.totalorder %s22, 1
      %p61 = por %p59, %p60
      %p62 = scmp.ne.s32.totalorder %s53, %s54
      %p63 = scmp.eq.s32.totalorder %s22, 0
      %p64 = por %p62, %p63
      %p65 = scmp.ne.s32.totalorder %s53, %s54
      %p66 = scmp.eq.s32.totalorder %s23, 1
      %p67 = por %p65, %p66
      %p69 = scmp.ne.s32.totalorder %s54, %s68
      %p70 = scmp.eq.s32.totalorder %s23, 0
      %p71 = por %p69, %p70
      %s73 = sadd.s32 %s72, 1
      %p76 = scmp.eq.s32.totalorder %s17, 1
      %p77 = scmp.ne.s32.totalorder %s72, %s74
      %p78 = scmp.eq.s32.totalorder %s17, 0
      %p79 = por %p77, %p78
      %p80 = scmp.ne.s32.totalorder %s72, %s74
      %p81 = scmp.eq.s32.totalorder %s22, 1
      %p82 = por %p80, %p81
      %p83 = scmp.ne.s32.totalorder %s74, %s75
      %p84 = scmp.eq.s32.totalorder %s22, 0
      %p85 = por %p83, %p84
      %p86 = scmp.ne.s32.totalorder %s74, %s75
      %p87 = scmp.eq.s32.totalorder %s23, 1
      %p88 = por %p86, %p87
      %p90 = scmp.ne.s32.totalorder %s75, %s89
      %p91 = scmp.eq.s32.totalorder %s23, 0
      %p92 = por %p90, %p91
      %s94 = sadd.s32 %s93, 1
      %p97 = scmp.eq.s32.totalorder %s17, 1
      %p98 = scmp.ne.s32.totalorder %s93, %s95
      %p99 = scmp.eq.s32.totalorder %s17, 0
      %p100 = por %p98, %p99
      %p101 = scmp.ne.s32.totalorder %s93, %s95
      %p102 = scmp.eq.s32.totalorder %s22, 1
      %p103 = por %p101, %p102
      %p104 = scmp.ne.s32.totalorder %s95, %s96
      %p105 = scmp.eq.s32.totalorder %s22, 0
      %p106 = por %p104, %p105
      %p107 = scmp.ne.s32.totalorder %s95, %s96
      %p108 = scmp.eq.s32.totalorder %s23, 1
      %p109 = por %p107, %p108
      %p111 = scmp.ne.s32.totalorder %s96, %s110
      %p112 = scmp.eq.s32.totalorder %s23, 0
      %p113 = por %p111, %p112
      %s115 = sadd.s32 %s114, 1
      %p118 = scmp.eq.s32.totalorder %s17, 1
      %p119 = scmp.ne.s32.totalorder %s114, %s116
      %p120 = scmp.eq.s32.totalorder %s17, 0
      %p121 = por %p119, %p120
      %p122 = scmp.ne.s32.totalorder %s114, %s116
      %p123 = scmp.eq.s32.totalorder %s22, 1
      %p124 = por %p122, %p123
      %p125 = scmp.ne.s32.totalorder %s116, %s117
      %p126 = scmp.eq.s32.totalorder %s22, 0
      %p127 = por %p125, %p126
      %p128 = scmp.ne.s32.totalorder %s116, %s117
      %p129 = scmp.eq.s32.totalorder %s23, 1
      %p130 = por %p128, %p129
      %p132 = scmp.ne.s32.totalorder %s117, %s131
      %p133 = scmp.eq.s32.totalorder %s23, 0
      %p134 = por %p132, %p133
      %s135 = ssub.s32 %s17, %s24
      %p136 = scmp.eq.s32.totalorder %s135, 0
      %s138 = sadd.s32 %s137, 1
      %s139 = scalar_select %p136, %s137, %s138
      %p142 = pneg %p136
      %p143 = scmp.eq.s32.totalorder %s17, 1
      %p144 = por %p142, %p143
      %p145 = scmp.ne.s32.totalorder %s137, %s140
      %p146 = scmp.eq.s32.totalorder %s17, 0
      %p147 = por %p145, %p146
      %p148 = scmp.ne.s32.totalorder %s137, %s140
      %p149 = scmp.eq.s32.totalorder %s22, 1
      %p150 = por %p148, %p149
      %p151 = scmp.ne.s32.totalorder %s140, %s141
      %p152 = scmp.eq.s32.totalorder %s22, 0
      %p153 = por %p151, %p152
      %p154 = scmp.ne.s32.totalorder %s140, %s141
      %p155 = scmp.eq.s32.totalorder %s23, 1
      %p156 = por %p154, %p155
      %p158 = scmp.ne.s32.totalorder %s141, %s157
      %p159 = scmp.eq.s32.totalorder %s23, 0
      %p160 = por %p158, %p159
      %p161 = scmp.le.s32.totalorder 1, %s17
      %p162 = scmp.lt.s32.totalorder %s17, 3
      %p163 = pnand %p161, %p162
      %p164 = pneg %p163
      // Predicated region
      $region9: #{tpu_custom_call.1} parent=5 // pred_check
        _
      $region10: #{tpu_custom_call.1} parent=5 // pred_check_branch
        %166 = sbr.rel (%p163) target = $region12
      $region11: #{tpu_custom_call.1} parent=5 // pred_region
        %s167 = ssub.s32 %s17, 1
        // Predicated region
        $region13: #{tpu_custom_call.1} parent=11 // pred_check
          %p168 = pneg %p64
        $region14: #{tpu_custom_call.1} parent=11 // pred_check_branch
          %170 = sbr.rel (%p168) target = $region16
        $region15: #{tpu_custom_call.1} parent=11 // pred_region
          _
        $region16: #{tpu_custom_call.1} parent=11 // pred_fallthru
          _
        // Predicated region
        $region17: #{tpu_custom_call.1} parent=11 // pred_check
          %p171 = pneg %p85
        $region18: #{tpu_custom_call.1} parent=11 // pred_check_branch
          %173 = sbr.rel (%p171) target = $region20
        $region19: #{tpu_custom_call.1} parent=11 // pred_region
          _
        $region20: #{tpu_custom_call.1} parent=11 // pred_fallthru
          _
        // Predicated region
        $region21: #{tpu_custom_call.1} parent=11 // pred_check
          %p174 = pneg %p106
        $region22: #{tpu_custom_call.1} parent=11 // pred_check_branch
          %176 = sbr.rel (%p174) target = $region24
        $region23: #{tpu_custom_call.1} parent=11 // pred_region
          _
        $region24: #{tpu_custom_call.1} parent=11 // pred_fallthru
          _
        // Predicated region
        $region25: #{tpu_custom_call.1} parent=11 // pred_check
          %p177 = pneg %p127
        $region26: #{tpu_custom_call.1} parent=11 // pred_check_branch
          %179 = sbr.rel (%p177) target = $region28
        $region27: #{tpu_custom_call.1} parent=11 // pred_region
          _
        $region28: #{tpu_custom_call.1} parent=11 // pred_fallthru
          _
      $region12: #{tpu_custom_call.1} parent=5 // pred_fallthru
        _
      %p180 = scmp.lt.s32.totalorder %s17, 2
      // Predicated region
      $region29: #{tpu_custom_call.1} parent=5 // pred_check
        %p181 = pneg %p180
      $region30: #{tpu_custom_call.1} parent=5 // pred_check_branch
        %183 = sbr.rel (%p181) target = $region32
      $region31: #{tpu_custom_call.1} parent=5 // pred_region
        // Predicated region
        $region33: #{tpu_custom_call.1} parent=31 // pred_check
          %p184 = pneg %p37
        $region34: #{tpu_custom_call.1} parent=31 // pred_check_branch
          %186 = sbr.rel (%p184) target = $region36
        $region35: #{tpu_custom_call.1} parent=31 // pred_region
          %s187 = sand.u32 %s27, 1
          %s188 = scalar_lea.sflag [#allocation3], %s187
          %s189 = sand.u32 %s27, 1
          %s190 = smul.addr %s189, 128
          %s191 = scalar_lea.vmem [#allocation2], %s190
          %s193 = ssub.s32 2048, 2048
          %194 = vsyncadd %s188, %s193
          %s195 = smul.addr %s17, 16
          %s196 = smul.addr %s195, 128
          %s197 = scalar_lea.hbm %s0, %s196
          %s198 = sshll.u32 %s191, 4
          %s199 = int_to_ptr.vmem [resolvable:$true] %s198
          %204 = dma.hbm_to_vmem [thread:$0]  %s197, 2048, %s199, %s188, 256, 256, 16
        $region36: #{tpu_custom_call.1} parent=31 // pred_fallthru
          _
      $region32: #{tpu_custom_call.1} parent=5 // pred_fallthru
        _
      %p205 = scmp.le.s32.totalorder 1, %s17
      %p206 = scmp.lt.s32.totalorder %s17, 3
      %p207 = pnand %p205, %p206
      %p208 = pneg %p207
      // Predicated region
      $region37: #{tpu_custom_call.1} parent=5 // pred_check
        _
      $region38: #{tpu_custom_call.1} parent=5 // pred_check_branch
        %210 = sbr.rel (%p207) target = $region40
      $region39: #{tpu_custom_call.1} parent=5 // pred_region
        %s211 = ssub.s32 %s17, 1
        %s212 = sand.u32 %s30, 1
        %s213 = scalar_lea.sflag [#allocation3], %s212
        %s214 = sand.u32 %s30, 1
        %s215 = smul.addr %s214, 128
        %s216 = scalar_lea.vmem [#allocation2], %s215
        // Predicated region
        $region41: #{tpu_custom_call.1} parent=39 // pred_check
          %p217 = pneg %p43
        $region42: #{tpu_custom_call.1} parent=39 // pred_check_branch
          %219 = sbr.rel (%p217) target = $region44
        $region43: #{tpu_custom_call.1} parent=39 // pred_region
          %220 = dma.done %s213, 2048
        $region44: #{tpu_custom_call.1} parent=39 // pred_fallthru
          _
        %s221 = sand.u32 %s30, 1
        %s222 = scalar_lea.sflag [#allocation3], %s221
        %s223 = sand.u32 %s30, 1
        %s224 = smul.addr %s223, 128
        %s225 = scalar_lea.vmem [#allocation2], %s224
        %p226 = pneg %p43
        %p227 = pneg %p40
        %p228 = pneg %p64
        %p229 = pneg %p61
        %p230 = pneg %p85
        %p231 = pneg %p82
        %p232 = pneg %p106
        %p233 = pneg %p103
        %p234 = pneg %p127
        %p235 = pneg %p124
        %p236 = pneg %p153
        %p237 = pneg %p150
        %s238 = sand.u32 %s140, 1
        %s239 = scalar_lea.sflag [#allocation4], %s238
        %s240 = sand.u32 %s140, 1
        %s241 = smul.addr %s240, 128
        %s242 = scalar_lea.vmem [#allocation5], %s241
        %v243 = vld [vmem:[%s216] sm:$0xff]
        %v244 = vld [vmem:[%s216 + $0x8] sm:$0xff]
        %v245 = vld [vmem:[%s216 + $0x10] sm:$0xff]
        %v246 = vld [vmem:[%s216 + $0x18] sm:$0xff]
        %v247 = vld [vmem:[%s216 + $0x20] sm:$0xff]
        %v248 = vld [vmem:[%s216 + $0x28] sm:$0xff]
        %v249 = vld [vmem:[%s216 + $0x30] sm:$0xff]
        %v250 = vld [vmem:[%s216 + $0x38] sm:$0xff]
        %v251 = vld [vmem:[%s216 + $0x40] sm:$0xff]
        %v252 = vld [vmem:[%s216 + $0x48] sm:$0xff]
        %v253 = vld [vmem:[%s216 + $0x50] sm:$0xff]
        %v254 = vld [vmem:[%s216 + $0x58] sm:$0xff]
        %v255 = vld [vmem:[%s216 + $0x60] sm:$0xff]
        %v256 = vld [vmem:[%s216 + $0x68] sm:$0xff]
        %v257 = vld [vmem:[%s216 + $0x70] sm:$0xff]
        %v258 = vld [vmem:[%s216 + $0x78] sm:$0xff]
        %v259 = vadd.f32 %v243, %v244
        %260 = vadd.xlane.f32.xlu0 %v259
        %v261 = vpop.xlane.xlu0 %260
        %v262 = vadd.f32 %v245, %v246
        %263 = vadd.xlane.f32.xlu0 %v262
        %v264 = vpop.xlane.xlu0 %263
        %v265 = vadd.f32 %v247, %v248
        %266 = vadd.xlane.f32.xlu0 %v265
        %v267 = vpop.xlane.xlu0 %266
        %v268 = vadd.f32 %v249, %v250
        %269 = vadd.xlane.f32.xlu0 %v268
        %v270 = vpop.xlane.xlu0 %269
        %v271 = vadd.f32 %v251, %v252
        %272 = vadd.xlane.f32.xlu0 %v271
        %v273 = vpop.xlane.xlu0 %272
        %v274 = vadd.f32 %v253, %v254
        %275 = vadd.xlane.f32.xlu0 %v274
        %v276 = vpop.xlane.xlu0 %275
        %v277 = vadd.f32 %v255, %v256
        %278 = vadd.xlane.f32.xlu0 %v277
        %v279 = vpop.xlane.xlu0 %278
        %v280 = vadd.f32 %v257, %v258
        %281 = vadd.xlane.f32.xlu0 %v280
        %v282 = vpop.xlane.xlu0 %281
        %v283 = vmul.f32 %v261, 0.00390625
        %v284 = vmul.f32 %v264, 0.00390625
        %v285 = vmul.f32 %v267, 0.00390625
        %v286 = vmul.f32 %v270, 0.00390625
        %v287 = vmul.f32 %v273, 0.00390625
        %v288 = vmul.f32 %v276, 0.00390625
        %v289 = vmul.f32 %v279, 0.00390625
        %v290 = vmul.f32 %v282, 0.00390625
        %v291 = vld [vmem:[%s1] sm:$0xff]
        %v292 = vld [vmem:[%s1 + $0x8] sm:$0xff]
        %v293 = vld [vmem:[%s1 + $0x10] sm:$0xff]
        %v294 = vld [vmem:[%s1 + $0x18] sm:$0xff]
        %v295 = vld [vmem:[%s1 + $0x20] sm:$0xff]
        %v296 = vld [vmem:[%s1 + $0x28] sm:$0xff]
        %v297 = vld [vmem:[%s1 + $0x30] sm:$0xff]
        %v298 = vld [vmem:[%s1 + $0x38] sm:$0xff]
        %v299 = vmul.f32 %v291, %v283
        %v300 = vmul.f32 %v292, %v284
        %v301 = vmul.f32 %v293, %v285
        %v302 = vmul.f32 %v294, %v286
        %v303 = vmul.f32 %v295, %v287
        %v304 = vmul.f32 %v296, %v288
        %v305 = vmul.f32 %v297, %v289
        %v306 = vmul.f32 %v298, %v290
        %vm307 = vcmask 130048
        %v308 = vsel %vm307, %v299, 0.0
        %v309 = vsel %vm307, %v300, 0.0
        %v310 = vadd.f32 %v308, %v309
        %v311 = vsel %vm307, %v301, 0.0
        %v312 = vadd.f32 %v310, %v311
        %v313 = vsel %vm307, %v302, 0.0
        %v314 = vadd.f32 %v312, %v313
        %v315 = vsel %vm307, %v303, 0.0
        %v316 = vadd.f32 %v314, %v315
        %v317 = vsel %vm307, %v304, 0.0
        %v318 = vadd.f32 %v316, %v317
        %v319 = vsel %vm307, %v305, 0.0
        %v320 = vadd.f32 %v318, %v319
        %v321 = vsel %vm307, %v306, 0.0
        %v322 = vadd.f32 %v320, %v321
        %v323 = vrot.slane %v322, 4
        %v324 = vadd.f32 %v322, %v323
        %v325 = vrot.slane %v324, 2
        %v326 = vadd.f32 %v324, %v325
        %v327 = vrot.slane %v326, 1
        %v328 = vadd.f32 %v326, %v327
        %v329 = vld [vmem:[%s2] sm:$0x1]
        %v330 = vadd.f32 %v328, %v329
        %v331 = vxor.u32 %v330, 2147483648
        %v332 = vmul.f32 %v331, 1.442695
        %v333 = vpow.pop %v332
        %v334 = vadd.f32 %v333, 1.0
        %v335 = vrcp.pop %v334
        %v336 = vmul.f32 1.0, %v335
        %v337 = vmul.f32 %v330, %v336
        %v338 = vld [vmem:[%s3] sm:$0xff]
        %v339 = vld [vmem:[%s3 + $0x8] sm:$0xff]
        %v340 = vld [vmem:[%s3 + $0x10] sm:$0xff]
        %v341 = vld [vmem:[%s3 + $0x18] sm:$0xff]
        %v342 = vld [vmem:[%s3 + $0x20] sm:$0xff]
        %v343 = vld [vmem:[%s3 + $0x28] sm:$0xff]
        %v344 = vld [vmem:[%s3 + $0x30] sm:$0xff]
        %v345 = vld [vmem:[%s3 + $0x38] sm:$0xff]
        %v346 = vlaneseq
        %v347 = vshrl.u32 %v346, 7
        %v348 = vsub.s32 0, %v347
        %v349 = vrot.slane %v337, %v348
        %v350 = vmul.f32 %v338, %v349
        %v351 = vmul.f32 %v339, %v349
        %v352 = vmul.f32 %v340, %v349
        %v353 = vmul.f32 %v341, %v349
        %v354 = vmul.f32 %v342, %v349
        %v355 = vmul.f32 %v343, %v349
        %v356 = vmul.f32 %v344, %v349
        %v357 = vmul.f32 %v345, %v349
        %v358 = vsel %vm307, %v350, 0.0
        %359 = vadd.xlane.f32.xlu0 %v358
        %v360 = vpop.xlane.xlu0 %359
        %v361 = vsel %vm307, %v351, 0.0
        %362 = vadd.xlane.f32.xlu0 %v361
        %v363 = vpop.xlane.xlu0 %362
        %v364 = vsel %vm307, %v352, 0.0
        %365 = vadd.xlane.f32.xlu0 %v364
        %v366 = vpop.xlane.xlu0 %365
        %v367 = vsel %vm307, %v353, 0.0
        %368 = vadd.xlane.f32.xlu0 %v367
        %v369 = vpop.xlane.xlu0 %368
        %v370 = vsel %vm307, %v354, 0.0
        %371 = vadd.xlane.f32.xlu0 %v370
        %v372 = vpop.xlane.xlu0 %371
        %v373 = vsel %vm307, %v355, 0.0
        %374 = vadd.xlane.f32.xlu0 %v373
        %v375 = vpop.xlane.xlu0 %374
        %v376 = vsel %vm307, %v356, 0.0
        %377 = vadd.xlane.f32.xlu0 %v376
        %v378 = vpop.xlane.xlu0 %377
        %v379 = vsel %vm307, %v357, 0.0
        %380 = vadd.xlane.f32.xlu0 %v379
        %v381 = vpop.xlane.xlu0 %380
        %v382 = vld [vmem:[%s4] sm:$0xff]
        %v383 = vld [vmem:[%s4 + $0x8] sm:$0xff]
        %v384 = vld [vmem:[%s4 + $0x10] sm:$0xff]
        %v385 = vld [vmem:[%s4 + $0x18] sm:$0xff]
        %v386 = vld [vmem:[%s4 + $0x20] sm:$0xff]
        %v387 = vld [vmem:[%s4 + $0x28] sm:$0xff]
        %v388 = vld [vmem:[%s4 + $0x30] sm:$0xff]
        %v389 = vld [vmem:[%s4 + $0x38] sm:$0xff]
        %v390 = vadd.f32 %v360, %v382
        %v391 = vadd.f32 %v363, %v383
        %v392 = vadd.f32 %v366, %v384
        %v393 = vadd.f32 %v369, %v385
        %v394 = vadd.f32 %v372, %v386
        %v395 = vadd.f32 %v375, %v387
        %v396 = vadd.f32 %v378, %v388
        %v397 = vadd.f32 %v381, %v389
        %v398 = vxor.u32 %v390, 2147483648
        %v399 = vxor.u32 %v391, 2147483648
        %v400 = vxor.u32 %v392, 2147483648
        %v401 = vxor.u32 %v393, 2147483648
        %v402 = vxor.u32 %v394, 2147483648
        %v403 = vxor.u32 %v395, 2147483648
        %v404 = vxor.u32 %v396, 2147483648
        %v405 = vxor.u32 %v397, 2147483648
        %v406 = vmul.f32 %v398, 1.442695
        %v407 = vpow.pop %v406
        %v408 = vmul.f32 %v399, 1.442695
        %v409 = vpow.pop %v408
        %v410 = vmul.f32 %v400, 1.442695
        %v411 = vpow.pop %v410
        %v412 = vmul.f32 %v401, 1.442695
        %v413 = vpow.pop %v412
        %v414 = vmul.f32 %v402, 1.442695
        %v415 = vpow.pop %v414
        %v416 = vmul.f32 %v403, 1.442695
        %v417 = vpow.pop %v416
        %v418 = vmul.f32 %v404, 1.442695
        %v419 = vpow.pop %v418
        %v420 = vmul.f32 %v405, 1.442695
        %v421 = vpow.pop %v420
        %v422 = vadd.f32 %v407, 1.0
        %v423 = vadd.f32 %v409, 1.0
        %v424 = vadd.f32 %v411, 1.0
        %v425 = vadd.f32 %v413, 1.0
        %v426 = vadd.f32 %v415, 1.0
        %v427 = vadd.f32 %v417, 1.0
        %v428 = vadd.f32 %v419, 1.0
        %v429 = vadd.f32 %v421, 1.0
        %v430 = vrcp.pop %v422
        %v431 = vmul.f32 1.0, %v430
        %v432 = vrcp.pop %v423
        %v433 = vmul.f32 1.0, %v432
        %v434 = vrcp.pop %v424
        %v435 = vmul.f32 1.0, %v434
        %v436 = vrcp.pop %v425
        %v437 = vmul.f32 1.0, %v436
        %v438 = vrcp.pop %v426
        %v439 = vmul.f32 1.0, %v438
        %v440 = vrcp.pop %v427
        %v441 = vmul.f32 1.0, %v440
        %v442 = vrcp.pop %v428
        %v443 = vmul.f32 1.0, %v442
        %v444 = vrcp.pop %v429
        %v445 = vmul.f32 1.0, %v444
        %447 = vset.pattern.permute.xlu0 0
        %448 = vperm.xlu0 %447, %v431
        %v449 = vpop.permute.xlu0 %448
        %452 = vset.pattern.permute.xlu0 0
        %453 = vperm.xlu0 %452, %v433
        %v454 = vpop.permute.xlu0 %453
        %457 = vset.pattern.permute.xlu0 0
        %458 = vperm.xlu0 %457, %v435
        %v459 = vpop.permute.xlu0 %458
        %462 = vset.pattern.permute.xlu0 0
        %463 = vperm.xlu0 %462, %v437
        %v464 = vpop.permute.xlu0 %463
        %467 = vset.pattern.permute.xlu0 0
        %468 = vperm.xlu0 %467, %v439
        %v469 = vpop.permute.xlu0 %468
        %472 = vset.pattern.permute.xlu0 0
        %473 = vperm.xlu0 %472, %v441
        %v474 = vpop.permute.xlu0 %473
        %477 = vset.pattern.permute.xlu0 0
        %478 = vperm.xlu0 %477, %v443
        %v479 = vpop.permute.xlu0 %478
        %482 = vset.pattern.permute.xlu0 0
        %483 = vperm.xlu0 %482, %v445
        %v484 = vpop.permute.xlu0 %483
        %v486 = vmul.f32 %v243, %v449
        %v487 = vmul.f32 %v244, %v449
        %v488 = vmul.f32 %v245, %v454
        %v489 = vmul.f32 %v246, %v454
        %v490 = vmul.f32 %v247, %v459
        %v491 = vmul.f32 %v248, %v459
        %v492 = vmul.f32 %v249, %v464
        %v493 = vmul.f32 %v250, %v464
        %v494 = vmul.f32 %v251, %v469
        %v495 = vmul.f32 %v252, %v469
        %v496 = vmul.f32 %v253, %v474
        %v497 = vmul.f32 %v254, %v474
        %v498 = vmul.f32 %v255, %v479
        %v499 = vmul.f32 %v256, %v479
        %v500 = vmul.f32 %v257, %v484
        %v501 = vmul.f32 %v258, %v484
        %502 = vst [vmem:[%s242] sm:$0xff] %v486
        %503 = vst [vmem:[%s242 + $0x8] sm:$0xff] %v487
        %504 = vst [vmem:[%s242 + $0x10] sm:$0xff] %v488
        %505 = vst [vmem:[%s242 + $0x18] sm:$0xff] %v489
        %506 = vst [vmem:[%s242 + $0x20] sm:$0xff] %v490
        %507 = vst [vmem:[%s242 + $0x28] sm:$0xff] %v491
        %508 = vst [vmem:[%s242 + $0x30] sm:$0xff] %v492
        %509 = vst [vmem:[%s242 + $0x38] sm:$0xff] %v493
        %510 = vst [vmem:[%s242 + $0x40] sm:$0xff] %v494
        %511 = vst [vmem:[%s242 + $0x48] sm:$0xff] %v495
        %512 = vst [vmem:[%s242 + $0x50] sm:$0xff] %v496
        %513 = vst [vmem:[%s242 + $0x58] sm:$0xff] %v497
        %514 = vst [vmem:[%s242 + $0x60] sm:$0xff] %v498
        %515 = vst [vmem:[%s242 + $0x68] sm:$0xff] %v499
        %516 = vst [vmem:[%s242 + $0x70] sm:$0xff] %v500
        %517 = vst [vmem:[%s242 + $0x78] sm:$0xff] %v501
        %s518 = sand.u32 %s140, 1
        %s519 = scalar_lea.sflag [#allocation4], %s518
        %s520 = sand.u32 %s140, 1
        %s521 = smul.addr %s520, 128
        %s522 = scalar_lea.vmem [#allocation5], %s521
        // Predicated region
        $region45: #{tpu_custom_call.1} parent=39 // pred_check
          %p523 = pneg %p150
        $region46: #{tpu_custom_call.1} parent=39 // pred_check_branch
          %525 = sbr.rel (%p523) target = $region48
        $region47: #{tpu_custom_call.1} parent=39 // pred_region
          %s527 = ssub.s32 2048, 2048
          %528 = vsyncadd %s519, %s527
          %s529 = smul.addr %s22, 16
          %s530 = smul.addr %s529, 128
          %s531 = scalar_lea.hbm %s5, %s530
          %s532 = sshll.u32 %s522, 4
          %s533 = int_to_ptr.vmem [resolvable:$true] %s532
          %538 = dma.vmem_to_hbm [thread:$0]  %s533, 2048, %s531, %s519, 256, 256, 16
        $region48: #{tpu_custom_call.1} parent=39 // pred_fallthru
          _
      $region40: #{tpu_custom_call.1} parent=5 // pred_fallthru
        _
      %p539 = scmp.le.s32.totalorder 2, %s17
      // Predicated region
      $region49: #{tpu_custom_call.1} parent=5 // pred_check
        %p540 = pneg %p539
      $region50: #{tpu_custom_call.1} parent=5 // pred_check_branch
        %542 = sbr.rel (%p540) target = $region52
      $region51: #{tpu_custom_call.1} parent=5 // pred_region
        %s543 = ssub.s32 %s17, 2
        // Predicated region
        $region53: #{tpu_custom_call.1} parent=51 // pred_check
          %p544 = pneg %p156
        $region54: #{tpu_custom_call.1} parent=51 // pred_check_branch
          %546 = sbr.rel (%p544) target = $region56
        $region55: #{tpu_custom_call.1} parent=51 // pred_region
          %s547 = sand.u32 %s141, 1
          %s548 = scalar_lea.sflag [#allocation4], %s547
          %s549 = sand.u32 %s141, 1
          %s550 = smul.addr %s549, 128
          %s551 = scalar_lea.vmem [#allocation5], %s550
          %552 = dma.done %s548, 2048
        $region56: #{tpu_custom_call.1} parent=51 // pred_fallthru
          _
      $region52: #{tpu_custom_call.1} parent=5 // pred_fallthru
        _
    $region6: #{tpu_custom_call.1} parent=1 // loop_footer
      %s21 = sadd.s32 1, %s17
    $region7: #{tpu_custom_call.1} parent=1 // loop_footer_branch
      %16 = sbr.rel target = $region3
    $region8: #{tpu_custom_call.1} parent=1 // loop_exit
      _
    %553 = vsyncpa [#allocation3], 1
    %s554 = scalar_lea.sflag [#allocation3], 1
    %555 = vsyncpa %s554, 1
    %556 = vsyncpa [#allocation4], 1
    %s557 = scalar_lea.sflag [#allocation4], 1
    %558 = vsyncpa %s557, 1

</llo_original>
